<compile_context>
chip_gen: v7x
topology: tpu7x:2x2x1
jax: 0.10.0
libtpu: 0.0.40
codegen_flags: <defaults>
</compile_context>

<pallas_src>
import jax
import jax.numpy as jnp
from jax.experimental import pallas as pl
from jax.experimental.pallas import tpu as pltpu


_ROWS_PER_ITER = 8  # statically unrolled descriptor starts per pl.loop iter


def _issue_row_dmas(tokens_smem, tok_hbm, gbuf, sem, slot, b_idx, base, s_blk):
    """Issue s_blk per-row HBM->VMEM gather DMAs into gbuf[slot]."""
    n_chunks = s_blk // _ROWS_PER_ITER

    @pl.loop(0, n_chunks)
    def _issue(c):
        r0 = pl.multiple_of(c * _ROWS_PER_ITER, _ROWS_PER_ITER)
        # Static inner unroll: 8 independent descriptor setups per iteration
        # so the scheduler can pack scalar-slot / misc-slot work.
        for u in range(_ROWS_PER_ITER):
            r = r0 + u
            tok_id = tokens_smem[b_idx, base + r]  # already clamped in wrapper
            pltpu.make_async_copy(
                tok_hbm.at[pl.ds(tok_id, 1), :],
                gbuf.at[slot, pl.ds(r, 1), :],
                sem.at[slot],
            ).start()


def _embed_gather_add_kernel(tokens_smem, pos_ref, tok_hbm, out_ref, gbuf, sem):
    # tokens_smem: (B, S) int32 in SMEM (scalar prefetch, pre-clamped).
    # pos_ref:     (s_blk, E) positional slab for this sequence block (VMEM).
    # tok_hbm:     (vocab, E) token embedding table, raw HBM ref.
    # out_ref:     (s_blk, E) output slab at (batch b, seq block sb) (Squeezed b).
    # gbuf:        (2, s_blk, E) double-buffered VMEM gather scratch.
    # sem:         (2,) DMA semaphores, one per gather slot.
    sb = pl.program_id(0)
    b = pl.program_id(1)
    n_b = pl.num_programs(1)
    _, s_blk, _ = gbuf.shape
    base = sb * s_blk
    slot = b % 2

    # Prologue: first batch step of this sequence block gathers into slot 0.
    @pl.when(b == 0)
    def _():
        _issue_row_dmas(tokens_smem, tok_hbm, gbuf, sem, 0, b, base, s_blk)

    # Prefetch the next batch step's gather into the other slot *before*
    # waiting on the current slot (overlaps issue + DMA latency with compute).
    @pl.when(b + 1 < n_b)
    def _():
        _issue_row_dmas(tokens_smem, tok_hbm, gbuf, sem, 1 - slot, b + 1,
                        base, s_blk)

    # One bulk wait for all s_blk row copies of the current slot (DMA
    # semaphores count bytes; this descriptor covers the same total bytes).
    pltpu.make_async_copy(
        tok_hbm.at[pl.ds(0, s_blk), :], gbuf.at[slot], sem.at[slot]
    ).wait()

    out_ref[...] = (gbuf[slot] + pos_ref[...]).astype(out_ref.dtype)


def _pick_s_blk(S, requested):
    s_blk = min(requested, S)
    s_blk -= s_blk % 8
    while s_blk > 8 and S % s_blk != 0:
        s_blk -= 8
    return s_blk


def token_and_positional_embedding(tokens, token_table, pos_table, *, s_blk=512):
    """tokens: [B, S] int -> [B, S, E] (== token_table[tokens] + pos_table[:S])."""
    B, S = tokens.shape
    vocab, E = token_table.shape
    max_len, e2 = pos_table.shape
    assert E == e2, "token/positional embedding dims must match"
    assert S <= max_len, "sequence length exceeds positional table (max_len)"
    assert E % 128 == 0, "embed dim must be a multiple of 128 (lane dim)"
    assert S % 8 == 0, "sequence length must be a multiple of 8"

    s_blk = _pick_s_blk(S, s_blk)
    assert s_blk % 8 == 0 and S % s_blk == 0
    assert vocab >= s_blk, "vocab must be >= sequence block (bulk-wait descriptor)"
    n_sb = S // s_blk

    # Hoisted safety clamp (removes per-descriptor scalar work in the kernel).
    tokens = jnp.clip(tokens.astype(jnp.int32), 0, vocab - 1)
    # Keep numerics well-defined if the positional table dtype differs.
    pos_table = pos_table.astype(token_table.dtype)

    itemsize = jnp.dtype(token_table.dtype).itemsize
    blk_bytes = s_blk * E * itemsize
    # 2x gather scratch + 2x pos (double-buffered in) + 2x out (double-buffered
    # out) + margin; cap well under v7x's 64 MiB per-TC VMEM.
    vmem_limit = min(max(6 * blk_bytes + (4 << 20), 16 << 20), 48 << 20)

    grid_spec = pltpu.PrefetchScalarGridSpec(
        num_scalar_prefetch=1,          # tokens -> SMEM
        grid=(n_sb, B),                 # batch innermost: pos slab reused across b
        in_specs=[
            # positional slab for this sequence block (independent of b)
            pl.BlockSpec((s_blk, E), lambda sb, b, tok: (sb, 0)),
            # token embedding table stays in HBM; gathered manually per row
            pl.BlockSpec(memory_space=pl.ANY),
        ],
        out_specs=pl.BlockSpec((pl.Squeezed(), s_blk, E),
                               lambda sb, b, tok: (b, sb, 0)),
        scratch_shapes=[
            pltpu.VMEM((2, s_blk, E), token_table.dtype),
            pltpu.SemaphoreType.DMA((2,)),
        ],
    )

    return pl.pallas_call(
        _embed_gather_add_kernel,
        grid_spec=grid_spec,
        out_shape=jax.ShapeDtypeStruct((B, S, E), token_table.dtype),
        compiler_params=pltpu.CompilerParams(
            # sb parallel (megacore shards descriptor issue on v7x);
            # b arbitrary (sequential per core -> cross-step gather prefetch).
            dimension_semantics=("parallel", "arbitrary"),
            vmem_limit_bytes=vmem_limit,
        ),
    )(tokens, pos_table, token_table)


if __name__ == "__main__":
    # Small shapes consistent with the module (vocab_size, embed_size, max_len
    # scaled down; E a multiple of 128, S a multiple of the 8-aligned block).
    vocab_size, embed_size, max_len = 1000, 256, 64
    B, S = 2, 16
    s_blk = 8   # exercises multiple sequence blocks, prologue + prefetch steps

    key = jax.random.PRNGKey(0)
    k_tok, k_pos, k_ids = jax.random.split(key, 3)

    # nn.Embedding default init is N(0, 1) — deterministic synthetic weights.
    token_table = jax.random.normal(k_tok, (vocab_size, embed_size), jnp.float32)
    pos_table = jax.random.normal(k_pos, (max_len, embed_size), jnp.float32)
    tokens = jax.random.randint(k_ids, (B, S), 0, vocab_size, dtype=jnp.int32)

    out = token_and_positional_embedding(tokens, token_table, pos_table, s_blk=s_blk)
    out = jax.block_until_ready(out)

    # Pure-JAX reference (matches the PyTorch forward semantics exactly).
    ref = token_table[tokens] + pos_table[:S][None, :, :]

    assert out.shape == (B, S, embed_size), out.shape
    assert out.dtype == jnp.float32
    assert jnp.allclose(out, ref, atol=1e-6), "kernel output mismatch vs reference"

    print("KERNEL_OK")
</pallas_src>

<mosaic_0001>
module attributes {stable_mosaic.version = 11 : i64} {
  func.func @_embed_gather_add_kernel(%arg0: i32, %arg1: i32, %arg2: memref<2x16xi32, #tpu.memory_space<smem>>, %arg3: memref<8x256xf32, #tpu.memory_space<vmem>>, %arg4: memref<1000x256xf32, #tpu.memory_space<any>>, %arg5: memref<1x8x256xf32, #tpu.memory_space<vmem>>, %arg6: memref<2x8x256xf32, #tpu.memory_space<vmem>>, %arg7: memref<2x!tpu.dma_semaphore, #tpu.memory_space<semaphore_mem>>) attributes {dimension_semantics = [#tpu.dimension_semantics<parallel>, #tpu.dimension_semantics<arbitrary>], iteration_bounds = array<i64: 2, 2>, scalar_prefetch = 1 : i64, scratch_operands = 2 : i64, tpu.core_type = #tpu.core_type<tc>, window_params = [{transform_indices = @transform_0, window_bounds = array<i64: 8, 256>}, {}, {transform_indices = @transform_2, window_bounds = array<i64: 1, 8, 256>}]} {
    %c8_i32 = arith.constant 8 : i32
    %0 = arith.muli %arg0, %c8_i32 : i32
    %c2_i32 = arith.constant 2 : i32
    %c0_i32 = arith.constant 0 : i32
    %1 = arith.cmpi eq, %c2_i32, %c0_i32 : i32
    %c1_i32 = arith.constant 1 : i32
    %2 = arith.select %1, %c1_i32, %c2_i32 : i32
    %3 = arith.remsi %arg1, %2 : i32
    %c0_i32_0 = arith.constant 0 : i32
    %4 = arith.cmpi ne, %3, %c0_i32_0 : i32
    %c0_i32_1 = arith.constant 0 : i32
    %5 = arith.cmpi slt, %3, %c0_i32_1 : i32
    %c0_i32_2 = arith.constant 0 : i32
    %6 = arith.cmpi slt, %2, %c0_i32_2 : i32
    %7 = arith.xori %5, %6 : i1
    %8 = arith.andi %7, %4 : i1
    %9 = arith.addi %3, %2 : i32
    %10 = arith.select %8, %9, %3 : i32
    %c0_i32_3 = arith.constant 0 : i32
    %11 = arith.cmpi eq, %arg1, %c0_i32_3 : i32
    %12 = arith.extui %11 : i1 to i32
    %c0_i32_4 = arith.constant 0 : i32
    %13 = arith.cmpi ne, %12, %c0_i32_4 : i32
    scf.if %13 {
      %c0_i32_18 = arith.constant 0 : i32
      %c1_i32_19 = arith.constant 1 : i32
      %31 = arith.muli %c0_i32_18, %c1_i32_19 : i32
      %c0_i32_20 = arith.constant 0 : i32
      %32 = arith.addi %c0_i32_20, %31 : i32
      %c8_i32_21 = arith.constant 8 : i32
      %33 = arith.muli %32, %c8_i32_21 : i32
      %34 = tpu.assume_multiple %33, 8 : i32
      %c0_i32_22 = arith.constant 0 : i32
      %35 = arith.addi %34, %c0_i32_22 : i32
      %36 = arith.addi %0, %35 : i32
      %37 = arith.index_cast %arg1 : i32 to index
      %38 = arith.index_cast %36 : i32 to index
      %39 = memref.load %arg2[%37, %38] : memref<2x16xi32, #tpu.memory_space<smem>>
      %c0_i32_23 = arith.constant 0 : i32
      %c0_i32_24 = arith.constant 0 : i32
      %c0_i32_25 = arith.constant 0 : i32
      %40 = tpu.memref_slice %arg4[%39, %c0_i32_25] : memref<1000x256xf32, #tpu.memory_space<any>> -> memref<1x256xf32, #tpu.memory_space<any>>
      %c0_i32_26 = arith.constant 0 : i32
      %41 = tpu.memref_slice %arg6[%c0_i32_23, %35, %c0_i32_26] : memref<2x8x256xf32, #tpu.memory_space<vmem>> -> memref<1x1x256xf32, #tpu.memory_space<vmem>>
      %42 = tpu.memref_squeeze %41 : memref<1x1x256xf32, #tpu.memory_space<vmem>> -> memref<1x256xf32, #tpu.memory_space<vmem>>
      %43 = tpu.memref_slice %arg7[%c0_i32_24] : memref<2x!tpu.dma_semaphore, #tpu.memory_space<semaphore_mem>> -> memref<1x!tpu.dma_semaphore, #tpu.memory_space<semaphore_mem>>
      %44 = tpu.memref_squeeze %43 : memref<1x!tpu.dma_semaphore, #tpu.memory_space<semaphore_mem>> -> memref<!tpu.dma_semaphore, #tpu.memory_space<semaphore_mem>>
      tpu.enqueue_dma source(%40 : memref<1x256xf32, #tpu.memory_space<any>>) target(%42 : memref<1x256xf32, #tpu.memory_space<vmem>>) target_semaphore(%44 : memref<!tpu.dma_semaphore, #tpu.memory_space<semaphore_mem>>)
      %c1_i32_27 = arith.constant 1 : i32
      %45 = arith.addi %34, %c1_i32_27 : i32
      %46 = arith.addi %0, %45 : i32
      %47 = arith.index_cast %arg1 : i32 to index
      %48 = arith.index_cast %46 : i32 to index
      %49 = memref.load %arg2[%47, %48] : memref<2x16xi32, #tpu.memory_space<smem>>
      %c0_i32_28 = arith.constant 0 : i32
      %c0_i32_29 = arith.constant 0 : i32
      %c0_i32_30 = arith.constant 0 : i32
      %50 = tpu.memref_slice %arg4[%49, %c0_i32_30] : memref<1000x256xf32, #tpu.memory_space<any>> -> memref<1x256xf32, #tpu.memory_space<any>>
      %c0_i32_31 = arith.constant 0 : i32
      %51 = tpu.memref_slice %arg6[%c0_i32_28, %45, %c0_i32_31] : memref<2x8x256xf32, #tpu.memory_space<vmem>> -> memref<1x1x256xf32, #tpu.memory_space<vmem>>
      %52 = tpu.memref_squeeze %51 : memref<1x1x256xf32, #tpu.memory_space<vmem>> -> memref<1x256xf32, #tpu.memory_space<vmem>>
      %53 = tpu.memref_slice %arg7[%c0_i32_29] : memref<2x!tpu.dma_semaphore, #tpu.memory_space<semaphore_mem>> -> memref<1x!tpu.dma_semaphore, #tpu.memory_space<semaphore_mem>>
      %54 = tpu.memref_squeeze %53 : memref<1x!tpu.dma_semaphore, #tpu.memory_space<semaphore_mem>> -> memref<!tpu.dma_semaphore, #tpu.memory_space<semaphore_mem>>
      tpu.enqueue_dma source(%50 : memref<1x256xf32, #tpu.memory_space<any>>) target(%52 : memref<1x256xf32, #tpu.memory_space<vmem>>) target_semaphore(%54 : memref<!tpu.dma_semaphore, #tpu.memory_space<semaphore_mem>>)
      %c2_i32_32 = arith.constant 2 : i32
      %55 = arith.addi %34, %c2_i32_32 : i32
      %56 = arith.addi %0, %55 : i32
      %57 = arith.index_cast %arg1 : i32 to index
      %58 = arith.index_cast %56 : i32 to index
      %59 = memref.load %arg2[%57, %58] : memref<2x16xi32, #tpu.memory_space<smem>>
      %c0_i32_33 = arith.constant 0 : i32
      %c0_i32_34 = arith.constant 0 : i32
      %c0_i32_35 = arith.constant 0 : i32
      %60 = tpu.memref_slice %arg4[%59, %c0_i32_35] : memref<1000x256xf32, #tpu.memory_space<any>> -> memref<1x256xf32, #tpu.memory_space<any>>
      %c0_i32_36 = arith.constant 0 : i32
      %61 = tpu.memref_slice %arg6[%c0_i32_33, %55, %c0_i32_36] : memref<2x8x256xf32, #tpu.memory_space<vmem>> -> memref<1x1x256xf32, #tpu.memory_space<vmem>>
      %62 = tpu.memref_squeeze %61 : memref<1x1x256xf32, #tpu.memory_space<vmem>> -> memref<1x256xf32, #tpu.memory_space<vmem>>
      %63 = tpu.memref_slice %arg7[%c0_i32_34] : memref<2x!tpu.dma_semaphore, #tpu.memory_space<semaphore_mem>> -> memref<1x!tpu.dma_semaphore, #tpu.memory_space<semaphore_mem>>
      %64 = tpu.memref_squeeze %63 : memref<1x!tpu.dma_semaphore, #tpu.memory_space<semaphore_mem>> -> memref<!tpu.dma_semaphore, #tpu.memory_space<semaphore_mem>>
      tpu.enqueue_dma source(%60 : memref<1x256xf32, #tpu.memory_space<any>>) target(%62 : memref<1x256xf32, #tpu.memory_space<vmem>>) target_semaphore(%64 : memref<!tpu.dma_semaphore, #tpu.memory_space<semaphore_mem>>)
      %c3_i32 = arith.constant 3 : i32
      %65 = arith.addi %34, %c3_i32 : i32
      %66 = arith.addi %0, %65 : i32
      %67 = arith.index_cast %arg1 : i32 to index
      %68 = arith.index_cast %66 : i32 to index
      %69 = memref.load %arg2[%67, %68] : memref<2x16xi32, #tpu.memory_space<smem>>
      %c0_i32_37 = arith.constant 0 : i32
      %c0_i32_38 = arith.constant 0 : i32
      %c0_i32_39 = arith.constant 0 : i32
      %70 = tpu.memref_slice %arg4[%69, %c0_i32_39] : memref<1000x256xf32, #tpu.memory_space<any>> -> memref<1x256xf32, #tpu.memory_space<any>>
      %c0_i32_40 = arith.constant 0 : i32
      %71 = tpu.memref_slice %arg6[%c0_i32_37, %65, %c0_i32_40] : memref<2x8x256xf32, #tpu.memory_space<vmem>> -> memref<1x1x256xf32, #tpu.memory_space<vmem>>
      %72 = tpu.memref_squeeze %71 : memref<1x1x256xf32, #tpu.memory_space<vmem>> -> memref<1x256xf32, #tpu.memory_space<vmem>>
      %73 = tpu.memref_slice %arg7[%c0_i32_38] : memref<2x!tpu.dma_semaphore, #tpu.memory_space<semaphore_mem>> -> memref<1x!tpu.dma_semaphore, #tpu.memory_space<semaphore_mem>>
      %74 = tpu.memref_squeeze %73 : memref<1x!tpu.dma_semaphore, #tpu.memory_space<semaphore_mem>> -> memref<!tpu.dma_semaphore, #tpu.memory_space<semaphore_mem>>
      tpu.enqueue_dma source(%70 : memref<1x256xf32, #tpu.memory_space<any>>) target(%72 : memref<1x256xf32, #tpu.memory_space<vmem>>) target_semaphore(%74 : memref<!tpu.dma_semaphore, #tpu.memory_space<semaphore_mem>>)
      %c4_i32 = arith.constant 4 : i32
      %75 = arith.addi %34, %c4_i32 : i32
      %76 = arith.addi %0, %75 : i32
      %77 = arith.index_cast %arg1 : i32 to index
      %78 = arith.index_cast %76 : i32 to index
      %79 = memref.load %arg2[%77, %78] : memref<2x16xi32, #tpu.memory_space<smem>>
      %c0_i32_41 = arith.constant 0 : i32
      %c0_i32_42 = arith.constant 0 : i32
      %c0_i32_43 = arith.constant 0 : i32
      %80 = tpu.memref_slice %arg4[%79, %c0_i32_43] : memref<1000x256xf32, #tpu.memory_space<any>> -> memref<1x256xf32, #tpu.memory_space<any>>
      %c0_i32_44 = arith.constant 0 : i32
      %81 = tpu.memref_slice %arg6[%c0_i32_41, %75, %c0_i32_44] : memref<2x8x256xf32, #tpu.memory_space<vmem>> -> memref<1x1x256xf32, #tpu.memory_space<vmem>>
      %82 = tpu.memref_squeeze %81 : memref<1x1x256xf32, #tpu.memory_space<vmem>> -> memref<1x256xf32, #tpu.memory_space<vmem>>
      %83 = tpu.memref_slice %arg7[%c0_i32_42] : memref<2x!tpu.dma_semaphore, #tpu.memory_space<semaphore_mem>> -> memref<1x!tpu.dma_semaphore, #tpu.memory_space<semaphore_mem>>
      %84 = tpu.memref_squeeze %83 : memref<1x!tpu.dma_semaphore, #tpu.memory_space<semaphore_mem>> -> memref<!tpu.dma_semaphore, #tpu.memory_space<semaphore_mem>>
      tpu.enqueue_dma source(%80 : memref<1x256xf32, #tpu.memory_space<any>>) target(%82 : memref<1x256xf32, #tpu.memory_space<vmem>>) target_semaphore(%84 : memref<!tpu.dma_semaphore, #tpu.memory_space<semaphore_mem>>)
      %c5_i32 = arith.constant 5 : i32
      %85 = arith.addi %34, %c5_i32 : i32
      %86 = arith.addi %0, %85 : i32
      %87 = arith.index_cast %arg1 : i32 to index
      %88 = arith.index_cast %86 : i32 to index
      %89 = memref.load %arg2[%87, %88] : memref<2x16xi32, #tpu.memory_space<smem>>
      %c0_i32_45 = arith.constant 0 : i32
      %c0_i32_46 = arith.constant 0 : i32
      %c0_i32_47 = arith.constant 0 : i32
      %90 = tpu.memref_slice %arg4[%89, %c0_i32_47] : memref<1000x256xf32, #tpu.memory_space<any>> -> memref<1x256xf32, #tpu.memory_space<any>>
      %c0_i32_48 = arith.constant 0 : i32
      %91 = tpu.memref_slice %arg6[%c0_i32_45, %85, %c0_i32_48] : memref<2x8x256xf32, #tpu.memory_space<vmem>> -> memref<1x1x256xf32, #tpu.memory_space<vmem>>
      %92 = tpu.memref_squeeze %91 : memref<1x1x256xf32, #tpu.memory_space<vmem>> -> memref<1x256xf32, #tpu.memory_space<vmem>>
      %93 = tpu.memref_slice %arg7[%c0_i32_46] : memref<2x!tpu.dma_semaphore, #tpu.memory_space<semaphore_mem>> -> memref<1x!tpu.dma_semaphore, #tpu.memory_space<semaphore_mem>>
      %94 = tpu.memref_squeeze %93 : memref<1x!tpu.dma_semaphore, #tpu.memory_space<semaphore_mem>> -> memref<!tpu.dma_semaphore, #tpu.memory_space<semaphore_mem>>
      tpu.enqueue_dma source(%90 : memref<1x256xf32, #tpu.memory_space<any>>) target(%92 : memref<1x256xf32, #tpu.memory_space<vmem>>) target_semaphore(%94 : memref<!tpu.dma_semaphore, #tpu.memory_space<semaphore_mem>>)
      %c6_i32 = arith.constant 6 : i32
      %95 = arith.addi %34, %c6_i32 : i32
      %96 = arith.addi %0, %95 : i32
      %97 = arith.index_cast %arg1 : i32 to index
      %98 = arith.index_cast %96 : i32 to index
      %99 = memref.load %arg2[%97, %98] : memref<2x16xi32, #tpu.memory_space<smem>>
      %c0_i32_49 = arith.constant 0 : i32
      %c0_i32_50 = arith.constant 0 : i32
      %c0_i32_51 = arith.constant 0 : i32
      %100 = tpu.memref_slice %arg4[%99, %c0_i32_51] : memref<1000x256xf32, #tpu.memory_space<any>> -> memref<1x256xf32, #tpu.memory_space<any>>
      %c0_i32_52 = arith.constant 0 : i32
      %101 = tpu.memref_slice %arg6[%c0_i32_49, %95, %c0_i32_52] : memref<2x8x256xf32, #tpu.memory_space<vmem>> -> memref<1x1x256xf32, #tpu.memory_space<vmem>>
      %102 = tpu.memref_squeeze %101 : memref<1x1x256xf32, #tpu.memory_space<vmem>> -> memref<1x256xf32, #tpu.memory_space<vmem>>
      %103 = tpu.memref_slice %arg7[%c0_i32_50] : memref<2x!tpu.dma_semaphore, #tpu.memory_space<semaphore_mem>> -> memref<1x!tpu.dma_semaphore, #tpu.memory_space<semaphore_mem>>
      %104 = tpu.memref_squeeze %103 : memref<1x!tpu.dma_semaphore, #tpu.memory_space<semaphore_mem>> -> memref<!tpu.dma_semaphore, #tpu.memory_space<semaphore_mem>>
      tpu.enqueue_dma source(%100 : memref<1x256xf32, #tpu.memory_space<any>>) target(%102 : memref<1x256xf32, #tpu.memory_space<vmem>>) target_semaphore(%104 : memref<!tpu.dma_semaphore, #tpu.memory_space<semaphore_mem>>)
      %c7_i32 = arith.constant 7 : i32
      %105 = arith.addi %34, %c7_i32 : i32
      %106 = arith.addi %0, %105 : i32
      %107 = arith.index_cast %arg1 : i32 to index
      %108 = arith.index_cast %106 : i32 to index
      %109 = memref.load %arg2[%107, %108] : memref<2x16xi32, #tpu.memory_space<smem>>
      %c0_i32_53 = arith.constant 0 : i32
      %c0_i32_54 = arith.constant 0 : i32
      %c0_i32_55 = arith.constant 0 : i32
      %110 = tpu.memref_slice %arg4[%109, %c0_i32_55] : memref<1000x256xf32, #tpu.memory_space<any>> -> memref<1x256xf32, #tpu.memory_space<any>>
      %c0_i32_56 = arith.constant 0 : i32
      %111 = tpu.memref_slice %arg6[%c0_i32_53, %105, %c0_i32_56] : memref<2x8x256xf32, #tpu.memory_space<vmem>> -> memref<1x1x256xf32, #tpu.memory_space<vmem>>
      %112 = tpu.memref_squeeze %111 : memref<1x1x256xf32, #tpu.memory_space<vmem>> -> memref<1x256xf32, #tpu.memory_space<vmem>>
      %113 = tpu.memref_slice %arg7[%c0_i32_54] : memref<2x!tpu.dma_semaphore, #tpu.memory_space<semaphore_mem>> -> memref<1x!tpu.dma_semaphore, #tpu.memory_space<semaphore_mem>>
      %114 = tpu.memref_squeeze %113 : memref<1x!tpu.dma_semaphore, #tpu.memory_space<semaphore_mem>> -> memref<!tpu.dma_semaphore, #tpu.memory_space<semaphore_mem>>
      tpu.enqueue_dma source(%110 : memref<1x256xf32, #tpu.memory_space<any>>) target(%112 : memref<1x256xf32, #tpu.memory_space<vmem>>) target_semaphore(%114 : memref<!tpu.dma_semaphore, #tpu.memory_space<semaphore_mem>>)
      %c1_i32_57 = arith.constant 1 : i32
    } else {
    }
    %c1_i32_5 = arith.constant 1 : i32
    %14 = arith.addi %arg1, %c1_i32_5 : i32
    %c2_i32_6 = arith.constant 2 : i32
    %15 = arith.cmpi slt, %14, %c2_i32_6 : i32
    %16 = arith.extui %15 : i1 to i32
    %c0_i32_7 = arith.constant 0 : i32
    %17 = arith.cmpi ne, %16, %c0_i32_7 : i32
    scf.if %17 {
      %c1_i32_18 = arith.constant 1 : i32
      %31 = arith.subi %c1_i32_18, %10 : i32
      %c1_i32_19 = arith.constant 1 : i32
      %32 = arith.addi %arg1, %c1_i32_19 : i32
      %c0_i32_20 = arith.constant 0 : i32
      %c1_i32_21 = arith.constant 1 : i32
      %33 = arith.muli %c0_i32_20, %c1_i32_21 : i32
      %c0_i32_22 = arith.constant 0 : i32
      %34 = arith.addi %c0_i32_22, %33 : i32
      %c8_i32_23 = arith.constant 8 : i32
      %35 = arith.muli %34, %c8_i32_23 : i32
      %36 = tpu.assume_multiple %35, 8 : i32
      %c0_i32_24 = arith.constant 0 : i32
      %37 = arith.addi %36, %c0_i32_24 : i32
      %38 = arith.addi %0, %37 : i32
      %39 = arith.index_cast %32 : i32 to index
      %40 = arith.index_cast %38 : i32 to index
      %41 = memref.load %arg2[%39, %40] : memref<2x16xi32, #tpu.memory_space<smem>>
      %c0_i32_25 = arith.constant 0 : i32
      %42 = tpu.memref_slice %arg4[%41, %c0_i32_25] : memref<1000x256xf32, #tpu.memory_space<any>> -> memref<1x256xf32, #tpu.memory_space<any>>
      %c0_i32_26 = arith.constant 0 : i32
      %43 = tpu.memref_slice %arg6[%31, %37, %c0_i32_26] : memref<2x8x256xf32, #tpu.memory_space<vmem>> -> memref<1x1x256xf32, #tpu.memory_space<vmem>>
      %44 = tpu.memref_squeeze %43 : memref<1x1x256xf32, #tpu.memory_space<vmem>> -> memref<1x256xf32, #tpu.memory_space<vmem>>
      %45 = tpu.memref_slice %arg7[%31] : memref<2x!tpu.dma_semaphore, #tpu.memory_space<semaphore_mem>> -> memref<1x!tpu.dma_semaphore, #tpu.memory_space<semaphore_mem>>
      %46 = tpu.memref_squeeze %45 : memref<1x!tpu.dma_semaphore, #tpu.memory_space<semaphore_mem>> -> memref<!tpu.dma_semaphore, #tpu.memory_space<semaphore_mem>>
      tpu.enqueue_dma source(%42 : memref<1x256xf32, #tpu.memory_space<any>>) target(%44 : memref<1x256xf32, #tpu.memory_space<vmem>>) target_semaphore(%46 : memref<!tpu.dma_semaphore, #tpu.memory_space<semaphore_mem>>)
      %c1_i32_27 = arith.constant 1 : i32
      %47 = arith.addi %36, %c1_i32_27 : i32
      %48 = arith.addi %0, %47 : i32
      %49 = arith.index_cast %32 : i32 to index
      %50 = arith.index_cast %48 : i32 to index
      %51 = memref.load %arg2[%49, %50] : memref<2x16xi32, #tpu.memory_space<smem>>
      %c0_i32_28 = arith.constant 0 : i32
      %52 = tpu.memref_slice %arg4[%51, %c0_i32_28] : memref<1000x256xf32, #tpu.memory_space<any>> -> memref<1x256xf32, #tpu.memory_space<any>>
      %c0_i32_29 = arith.constant 0 : i32
      %53 = tpu.memref_slice %arg6[%31, %47, %c0_i32_29] : memref<2x8x256xf32, #tpu.memory_space<vmem>> -> memref<1x1x256xf32, #tpu.memory_space<vmem>>
      %54 = tpu.memref_squeeze %53 : memref<1x1x256xf32, #tpu.memory_space<vmem>> -> memref<1x256xf32, #tpu.memory_space<vmem>>
      %55 = tpu.memref_slice %arg7[%31] : memref<2x!tpu.dma_semaphore, #tpu.memory_space<semaphore_mem>> -> memref<1x!tpu.dma_semaphore, #tpu.memory_space<semaphore_mem>>
      %56 = tpu.memref_squeeze %55 : memref<1x!tpu.dma_semaphore, #tpu.memory_space<semaphore_mem>> -> memref<!tpu.dma_semaphore, #tpu.memory_space<semaphore_mem>>
      tpu.enqueue_dma source(%52 : memref<1x256xf32, #tpu.memory_space<any>>) target(%54 : memref<1x256xf32, #tpu.memory_space<vmem>>) target_semaphore(%56 : memref<!tpu.dma_semaphore, #tpu.memory_space<semaphore_mem>>)
      %c2_i32_30 = arith.constant 2 : i32
      %57 = arith.addi %36, %c2_i32_30 : i32
      %58 = arith.addi %0, %57 : i32
      %59 = arith.index_cast %32 : i32 to index
      %60 = arith.index_cast %58 : i32 to index
      %61 = memref.load %arg2[%59, %60] : memref<2x16xi32, #tpu.memory_space<smem>>
      %c0_i32_31 = arith.constant 0 : i32
      %62 = tpu.memref_slice %arg4[%61, %c0_i32_31] : memref<1000x256xf32, #tpu.memory_space<any>> -> memref<1x256xf32, #tpu.memory_space<any>>
      %c0_i32_32 = arith.constant 0 : i32
      %63 = tpu.memref_slice %arg6[%31, %57, %c0_i32_32] : memref<2x8x256xf32, #tpu.memory_space<vmem>> -> memref<1x1x256xf32, #tpu.memory_space<vmem>>
      %64 = tpu.memref_squeeze %63 : memref<1x1x256xf32, #tpu.memory_space<vmem>> -> memref<1x256xf32, #tpu.memory_space<vmem>>
      %65 = tpu.memref_slice %arg7[%31] : memref<2x!tpu.dma_semaphore, #tpu.memory_space<semaphore_mem>> -> memref<1x!tpu.dma_semaphore, #tpu.memory_space<semaphore_mem>>
      %66 = tpu.memref_squeeze %65 : memref<1x!tpu.dma_semaphore, #tpu.memory_space<semaphore_mem>> -> memref<!tpu.dma_semaphore, #tpu.memory_space<semaphore_mem>>
      tpu.enqueue_dma source(%62 : memref<1x256xf32, #tpu.memory_space<any>>) target(%64 : memref<1x256xf32, #tpu.memory_space<vmem>>) target_semaphore(%66 : memref<!tpu.dma_semaphore, #tpu.memory_space<semaphore_mem>>)
      %c3_i32 = arith.constant 3 : i32
      %67 = arith.addi %36, %c3_i32 : i32
      %68 = arith.addi %0, %67 : i32
      %69 = arith.index_cast %32 : i32 to index
      %70 = arith.index_cast %68 : i32 to index
      %71 = memref.load %arg2[%69, %70] : memref<2x16xi32, #tpu.memory_space<smem>>
      %c0_i32_33 = arith.constant 0 : i32
      %72 = tpu.memref_slice %arg4[%71, %c0_i32_33] : memref<1000x256xf32, #tpu.memory_space<any>> -> memref<1x256xf32, #tpu.memory_space<any>>
      %c0_i32_34 = arith.constant 0 : i32
      %73 = tpu.memref_slice %arg6[%31, %67, %c0_i32_34] : memref<2x8x256xf32, #tpu.memory_space<vmem>> -> memref<1x1x256xf32, #tpu.memory_space<vmem>>
      %74 = tpu.memref_squeeze %73 : memref<1x1x256xf32, #tpu.memory_space<vmem>> -> memref<1x256xf32, #tpu.memory_space<vmem>>
      %75 = tpu.memref_slice %arg7[%31] : memref<2x!tpu.dma_semaphore, #tpu.memory_space<semaphore_mem>> -> memref<1x!tpu.dma_semaphore, #tpu.memory_space<semaphore_mem>>
      %76 = tpu.memref_squeeze %75 : memref<1x!tpu.dma_semaphore, #tpu.memory_space<semaphore_mem>> -> memref<!tpu.dma_semaphore, #tpu.memory_space<semaphore_mem>>
      tpu.enqueue_dma source(%72 : memref<1x256xf32, #tpu.memory_space<any>>) target(%74 : memref<1x256xf32, #tpu.memory_space<vmem>>) target_semaphore(%76 : memref<!tpu.dma_semaphore, #tpu.memory_space<semaphore_mem>>)
      %c4_i32 = arith.constant 4 : i32
      %77 = arith.addi %36, %c4_i32 : i32
      %78 = arith.addi %0, %77 : i32
      %79 = arith.index_cast %32 : i32 to index
      %80 = arith.index_cast %78 : i32 to index
      %81 = memref.load %arg2[%79, %80] : memref<2x16xi32, #tpu.memory_space<smem>>
      %c0_i32_35 = arith.constant 0 : i32
      %82 = tpu.memref_slice %arg4[%81, %c0_i32_35] : memref<1000x256xf32, #tpu.memory_space<any>> -> memref<1x256xf32, #tpu.memory_space<any>>
      %c0_i32_36 = arith.constant 0 : i32
      %83 = tpu.memref_slice %arg6[%31, %77, %c0_i32_36] : memref<2x8x256xf32, #tpu.memory_space<vmem>> -> memref<1x1x256xf32, #tpu.memory_space<vmem>>
      %84 = tpu.memref_squeeze %83 : memref<1x1x256xf32, #tpu.memory_space<vmem>> -> memref<1x256xf32, #tpu.memory_space<vmem>>
      %85 = tpu.memref_slice %arg7[%31] : memref<2x!tpu.dma_semaphore, #tpu.memory_space<semaphore_mem>> -> memref<1x!tpu.dma_semaphore, #tpu.memory_space<semaphore_mem>>
      %86 = tpu.memref_squeeze %85 : memref<1x!tpu.dma_semaphore, #tpu.memory_space<semaphore_mem>> -> memref<!tpu.dma_semaphore, #tpu.memory_space<semaphore_mem>>
      tpu.enqueue_dma source(%82 : memref<1x256xf32, #tpu.memory_space<any>>) target(%84 : memref<1x256xf32, #tpu.memory_space<vmem>>) target_semaphore(%86 : memref<!tpu.dma_semaphore, #tpu.memory_space<semaphore_mem>>)
      %c5_i32 = arith.constant 5 : i32
      %87 = arith.addi %36, %c5_i32 : i32
      %88 = arith.addi %0, %87 : i32
      %89 = arith.index_cast %32 : i32 to index
      %90 = arith.index_cast %88 : i32 to index
      %91 = memref.load %arg2[%89, %90] : memref<2x16xi32, #tpu.memory_space<smem>>
      %c0_i32_37 = arith.constant 0 : i32
      %92 = tpu.memref_slice %arg4[%91, %c0_i32_37] : memref<1000x256xf32, #tpu.memory_space<any>> -> memref<1x256xf32, #tpu.memory_space<any>>
      %c0_i32_38 = arith.constant 0 : i32
      %93 = tpu.memref_slice %arg6[%31, %87, %c0_i32_38] : memref<2x8x256xf32, #tpu.memory_space<vmem>> -> memref<1x1x256xf32, #tpu.memory_space<vmem>>
      %94 = tpu.memref_squeeze %93 : memref<1x1x256xf32, #tpu.memory_space<vmem>> -> memref<1x256xf32, #tpu.memory_space<vmem>>
      %95 = tpu.memref_slice %arg7[%31] : memref<2x!tpu.dma_semaphore, #tpu.memory_space<semaphore_mem>> -> memref<1x!tpu.dma_semaphore, #tpu.memory_space<semaphore_mem>>
      %96 = tpu.memref_squeeze %95 : memref<1x!tpu.dma_semaphore, #tpu.memory_space<semaphore_mem>> -> memref<!tpu.dma_semaphore, #tpu.memory_space<semaphore_mem>>
      tpu.enqueue_dma source(%92 : memref<1x256xf32, #tpu.memory_space<any>>) target(%94 : memref<1x256xf32, #tpu.memory_space<vmem>>) target_semaphore(%96 : memref<!tpu.dma_semaphore, #tpu.memory_space<semaphore_mem>>)
      %c6_i32 = arith.constant 6 : i32
      %97 = arith.addi %36, %c6_i32 : i32
      %98 = arith.addi %0, %97 : i32
      %99 = arith.index_cast %32 : i32 to index
      %100 = arith.index_cast %98 : i32 to index
      %101 = memref.load %arg2[%99, %100] : memref<2x16xi32, #tpu.memory_space<smem>>
      %c0_i32_39 = arith.constant 0 : i32
      %102 = tpu.memref_slice %arg4[%101, %c0_i32_39] : memref<1000x256xf32, #tpu.memory_space<any>> -> memref<1x256xf32, #tpu.memory_space<any>>
      %c0_i32_40 = arith.constant 0 : i32
      %103 = tpu.memref_slice %arg6[%31, %97, %c0_i32_40] : memref<2x8x256xf32, #tpu.memory_space<vmem>> -> memref<1x1x256xf32, #tpu.memory_space<vmem>>
      %104 = tpu.memref_squeeze %103 : memref<1x1x256xf32, #tpu.memory_space<vmem>> -> memref<1x256xf32, #tpu.memory_space<vmem>>
      %105 = tpu.memref_slice %arg7[%31] : memref<2x!tpu.dma_semaphore, #tpu.memory_space<semaphore_mem>> -> memref<1x!tpu.dma_semaphore, #tpu.memory_space<semaphore_mem>>
      %106 = tpu.memref_squeeze %105 : memref<1x!tpu.dma_semaphore, #tpu.memory_space<semaphore_mem>> -> memref<!tpu.dma_semaphore, #tpu.memory_space<semaphore_mem>>
      tpu.enqueue_dma source(%102 : memref<1x256xf32, #tpu.memory_space<any>>) target(%104 : memref<1x256xf32, #tpu.memory_space<vmem>>) target_semaphore(%106 : memref<!tpu.dma_semaphore, #tpu.memory_space<semaphore_mem>>)
      %c7_i32 = arith.constant 7 : i32
      %107 = arith.addi %36, %c7_i32 : i32
      %108 = arith.addi %0, %107 : i32
      %109 = arith.index_cast %32 : i32 to index
      %110 = arith.index_cast %108 : i32 to index
      %111 = memref.load %arg2[%109, %110] : memref<2x16xi32, #tpu.memory_space<smem>>
      %c0_i32_41 = arith.constant 0 : i32
      %112 = tpu.memref_slice %arg4[%111, %c0_i32_41] : memref<1000x256xf32, #tpu.memory_space<any>> -> memref<1x256xf32, #tpu.memory_space<any>>
      %c0_i32_42 = arith.constant 0 : i32
      %113 = tpu.memref_slice %arg6[%31, %107, %c0_i32_42] : memref<2x8x256xf32, #tpu.memory_space<vmem>> -> memref<1x1x256xf32, #tpu.memory_space<vmem>>
      %114 = tpu.memref_squeeze %113 : memref<1x1x256xf32, #tpu.memory_space<vmem>> -> memref<1x256xf32, #tpu.memory_space<vmem>>
      %115 = tpu.memref_slice %arg7[%31] : memref<2x!tpu.dma_semaphore, #tpu.memory_space<semaphore_mem>> -> memref<1x!tpu.dma_semaphore, #tpu.memory_space<semaphore_mem>>
      %116 = tpu.memref_squeeze %115 : memref<1x!tpu.dma_semaphore, #tpu.memory_space<semaphore_mem>> -> memref<!tpu.dma_semaphore, #tpu.memory_space<semaphore_mem>>
      tpu.enqueue_dma source(%112 : memref<1x256xf32, #tpu.memory_space<any>>) target(%114 : memref<1x256xf32, #tpu.memory_space<vmem>>) target_semaphore(%116 : memref<!tpu.dma_semaphore, #tpu.memory_space<semaphore_mem>>)
      %c1_i32_43 = arith.constant 1 : i32
    } else {
    }
    %c0_i32_8 = arith.constant 0 : i32
    %c0_i32_9 = arith.constant 0 : i32
    %18 = tpu.memref_slice %arg4[%c0_i32_8, %c0_i32_9] : memref<1000x256xf32, #tpu.memory_space<any>> -> memref<8x256xf32, #tpu.memory_space<any>>
    %c0_i32_10 = arith.constant 0 : i32
    %c0_i32_11 = arith.constant 0 : i32
    %19 = tpu.memref_slice %arg6[%10, %c0_i32_10, %c0_i32_11] : memref<2x8x256xf32, #tpu.memory_space<vmem>> -> memref<1x8x256xf32, #tpu.memory_space<vmem>>
    %20 = tpu.memref_squeeze %19 : memref<1x8x256xf32, #tpu.memory_space<vmem>> -> memref<8x256xf32, #tpu.memory_space<vmem>>
    %21 = tpu.memref_slice %arg7[%10] : memref<2x!tpu.dma_semaphore, #tpu.memory_space<semaphore_mem>> -> memref<1x!tpu.dma_semaphore, #tpu.memory_space<semaphore_mem>>
    %22 = tpu.memref_squeeze %21 : memref<1x!tpu.dma_semaphore, #tpu.memory_space<semaphore_mem>> -> memref<!tpu.dma_semaphore, #tpu.memory_space<semaphore_mem>>
    tpu.wait_dma2 semaphore(%22 : memref<!tpu.dma_semaphore, #tpu.memory_space<semaphore_mem>>) src(%18 : memref<8x256xf32, #tpu.memory_space<any>>) dst(%20 : memref<8x256xf32, #tpu.memory_space<vmem>>)
    %23 = arith.index_cast %10 : i32 to index
    %c0 = arith.constant 0 : index
    %c0_12 = arith.constant 0 : index
    %24 = vector.load %arg6[%23, %c0, %c0_12] : memref<2x8x256xf32, #tpu.memory_space<vmem>>, vector<1x8x256xf32>
    %25 = vector.shape_cast %24 : vector<1x8x256xf32> to vector<8x256xf32>
    %c0_13 = arith.constant 0 : index
    %c0_14 = arith.constant 0 : index
    %26 = vector.load %arg3[%c0_13, %c0_14] : memref<8x256xf32, #tpu.memory_space<vmem>>, vector<8x256xf32>
    %27 = arith.addf %25, %26 : vector<8x256xf32>
    %c0_15 = arith.constant 0 : index
    %c0_16 = arith.constant 0 : index
    %c0_17 = arith.constant 0 : index
    %28 = vector.load %arg5[%c0_15, %c0_16, %c0_17] : memref<1x8x256xf32, #tpu.memory_space<vmem>>, vector<1x8x256xf32>
    %29 = vector.shape_cast %28 : vector<1x8x256xf32> to vector<8x256xf32>
    %30 = vector.shape_cast %27 : vector<8x256xf32> to vector<1x8x256xf32>
    tpu.vector_store %arg5[%c0_15, %c0_16, %c0_17], %30 {strides = array<i32>} : memref<1x8x256xf32, #tpu.memory_space<vmem>>, vector<1x8x256xf32>,
    return
  }
  func.func @transform_0(%arg0: i32, %arg1: i32, %arg2: memref<2x16xi32, #tpu.memory_space<smem>>) -> (i32, i32) {
    %c0_i32 = arith.constant 0 : i32
    %c0_i32_0 = arith.constant 0 : i32
    return %arg0, %c0_i32 : i32, i32
  }
  func.func @transform_2(%arg0: i32, %arg1: i32, %arg2: memref<2x16xi32, #tpu.memory_space<smem>>) -> (i32, i32, i32) {
    %c0_i32 = arith.constant 0 : i32
    %c0_i32_0 = arith.constant 0 : i32
    return %arg1, %arg0, %c0_i32 : i32, i32, i32
  }
}

</mosaic_0001>

<llo_original>
// kernel: tpu_custom_call.1
$region0: #{tpu_custom_call.1}
  #allocation0 [shape = 'u32[]', space=smem, size = 0x4, offset = 0x4, fixed_abs, tag = 'smem constant byte address 0x4 - core index']
  #allocation1 [shape = 'u32[144,128]{1,0:T(1,128)}', space=vmem, size = 0x12000, scoped, tag = 'internal scratch']
  #allocation2 [shape = 'f32[2,8,256]{2,1,0:T(8,128)}', space=vmem, size = 0x4000, scoped, tag = 'scratch operand']
  #allocation3 [shape = 's32[2]{0}', space=sflag, size = 0x8, scoped, tag = 'scratch operand']
  #allocation4 [shape = 's32[1]{0}', space=sflag, size = 0x4, scoped, tag = 'scoped memory for tpu_custom_call.1']
  #allocation5 [shape = 'u8[1024]{0}', space=smem, size = 0x400, scoped, tag = 'prefetched SMEM operand 0']
  #allocation10 [shape = 's32[]', space=sflag, size = 0x4, offset = 0, fixed_abs, tag = 'sflag constant byte address 0x0 - dummy sync flag']
  #allocation11 [shape = 's32[]', space=sflag, size = 0x4, offset = 0, fixed_abs, tag = 'sflag constant byte address 0x0 - dummy sync flag']
  #allocation12 [shape = 's32[]', space=sflag, size = 0x4, offset = 0, fixed_abs, tag = 'sflag constant byte address 0x0 - dummy sync flag']
  #allocation13 [shape = 's32[]', space=sflag, size = 0x4, offset = 0, fixed_abs, tag = 'sflag constant byte address 0x0 - dummy sync flag']
  #allocation14 [shape = 's32[]', space=sflag, size = 0x4, offset = 0, fixed_abs, tag = 'sflag constant byte address 0x0 - dummy sync flag']
  #allocation15 [shape = 's32[]', space=sflag, size = 0x4, offset = 0, fixed_abs, tag = 'sflag constant byte address 0x0 - dummy sync flag']
  #allocation16 [shape = 's32[]', space=sflag, size = 0x4, offset = 0, fixed_abs, tag = 'sflag constant byte address 0x0 - dummy sync flag']
  #allocation17 [shape = 's32[]', space=sflag, size = 0x4, offset = 0, fixed_abs, tag = 'sflag constant byte address 0x0 - dummy sync flag']
  #allocation18 [shape = 's32[]', space=sflag, size = 0x4, offset = 0, fixed_abs, tag = 'sflag constant byte address 0x0 - dummy sync flag']
  #allocation19 [shape = 's32[]', space=sflag, size = 0x4, offset = 0, fixed_abs, tag = 'sflag constant byte address 0x0 - dummy sync flag']
  #allocation20 [shape = 's32[]', space=sflag, size = 0x4, offset = 0, fixed_abs, tag = 'sflag constant byte address 0x0 - dummy sync flag']
  #allocation21 [shape = 's32[]', space=sflag, size = 0x4, offset = 0, fixed_abs, tag = 'sflag constant byte address 0x0 - dummy sync flag']
  #allocation22 [shape = 's32[]', space=sflag, size = 0x4, offset = 0, fixed_abs, tag = 'sflag constant byte address 0x0 - dummy sync flag']
  #allocation23 [shape = 's32[]', space=sflag, size = 0x4, offset = 0, fixed_abs, tag = 'sflag constant byte address 0x0 - dummy sync flag']
  #allocation24 [shape = 's32[]', space=sflag, size = 0x4, offset = 0, fixed_abs, tag = 'sflag constant byte address 0x0 - dummy sync flag']
  #allocation25 [shape = 's32[]', space=sflag, size = 0x4, offset = 0, fixed_abs, tag = 'sflag constant byte address 0x0 - dummy sync flag']
  %s0 = inlined_call_operand.hbm [shape: s32[2,16], index: 0, kind: input, shape index: {}]
  %s1 = inlined_call_operand.hbm [shape: f32[64,256], index: 1, kind: input, shape index: {}]
  %s2 = inlined_call_operand.hbm [shape: f32[1000,256], index: 2, kind: input, shape index: {}]
  %s3 = inlined_call_operand.hbm [shape: f32[2,16,256], index: 3, kind: output, shape index: {}]
  %s4 = sld [smem:[#allocation0]]
  $region49: #{tpu_custom_call.1} parent=0
    _
  %s6 = ssub.s32 1, %s4
  %s7 = scalar_select 0, %s6, %s4
  %9 = dma.hbm_to_smem %s0, 32, [#allocation5], [#allocation4]
  %10 = dma.done [#allocation4], 32
  %11 = sfence
  $region1: #{tpu_custom_call.1} parent=0
    #allocation6 [shape = 'u8[16384]{0}', space=vmem, size = 0x4000, scoped, tag = 'input window, operand 1']
    #allocation7 [shape = 's32[2]{0}', space=sflag, size = 0x8, scoped, tag = 'scoped memory for tpu_custom_call.1']
    #allocation8 [shape = 's32[2]{0}', space=sflag, size = 0x8, scoped, tag = 'scoped memory for tpu_custom_call.1']
    #allocation9 [shape = 'u8[16384]{0}', space=vmem, size = 0x4000, scoped, tag = 'output window, operand 0']
    %12 = vsyncpa [#allocation7], 0
    %s13 = scalar_lea.sflag [#allocation7], 1
    %14 = vsyncpa %s13, 0
    %15 = vsyncpa [#allocation8], 0
    %s16 = scalar_lea.sflag [#allocation8], 1
    %17 = vsyncpa %s16, 0
    loop: start=0, step=1, limit=6
    $region2: #{tpu_custom_call.1} parent=1 // loop_pre_header
      _
    $region3: #{tpu_custom_call.1} parent=1 // loop_header
      %s19 = sphi 0, %s23
      %p20 = scmp.ge.s32.totalorder %s19, 6
      %s26 = sphi 0, %s38
      %s27 = sphi 0, %s34
      %s28 = sphi 0, %s26
      %s29 = sphi 0, %s27
      %s30 = sphi 0, %s28
      %s31 = sphi 0, %s29
      %s41 = sphi 0, %s43
      %s44 = sphi 0, %s41
      %s45 = sphi 0, %s44
      %s61 = sphi 0, %s45
      %s69 = sphi 0, %s71
      %s72 = sphi 0, %s69
      %s73 = sphi 0, %s72
      %s89 = sphi 0, %s73
    $region4: #{tpu_custom_call.1} parent=1 // loop_header_branch
      %22 = sbr.rel (%p20) target = $region8
    $region5: #{tpu_custom_call.1} parent=1 // loop_body
      %s24 = ssub.s32 %s19, 1
      %s25 = ssub.s32 %s19, 2
      %s32 = sadd.s32 1, %s27
      %p33 = scmp.ge.s32.totalorder %s32, 2
      %s34 = scalar_select %p33, 0, %s32
      %s35 = sadd.s32 1, %s26
      %s36 = scalar_select %p33, %s35, %s26
      %p37 = scmp.ge.s32.totalorder %s36, 2
      %s38 = scalar_select %p37, 0, %s36
      %s39 = ssub.s32 %s26, %s38
      %p40 = scmp.eq.s32.totalorder %s39, 0
      %s42 = sadd.s32 %s41, 1
      %s43 = scalar_select %p40, %s41, %s42
      %p46 = pneg %p40
      %p47 = scmp.eq.s32.totalorder %s19, 3
      %p48 = por %p46, %p47
      %p49 = scmp.ne.s32.totalorder %s41, %s44
      %p50 = scmp.eq.s32.totalorder %s19, 0
      %p51 = por %p49, %p50
      %p52 = scmp.ne.s32.totalorder %s41, %s44
      %p53 = scmp.eq.s32.totalorder %s24, 3
      %p54 = por %p52, %p53
      %p55 = scmp.ne.s32.totalorder %s44, %s45
      %p56 = scmp.eq.s32.totalorder %s24, 0
      %p57 = por %p55, %p56
      %p58 = scmp.ne.s32.totalorder %s44, %s45
      %p59 = scmp.eq.s32.totalorder %s25, 3
      %p60 = por %p58, %p59
      %p62 = scmp.ne.s32.totalorder %s45, %s61
      %p63 = scmp.eq.s32.totalorder %s25, 0
      %p64 = por %p62, %p63
      %s65 = ssub.s32 %s27, %s34
      %s66 = ssub.s32 %s26, %s38
      %s67 = sor.u32 %s65, %s66
      %p68 = scmp.eq.s32.totalorder %s67, 0
      %s70 = sadd.s32 %s69, 1
      %s71 = scalar_select %p68, %s69, %s70
      %p74 = pneg %p68
      %p75 = scmp.eq.s32.totalorder %s19, 3
      %p76 = por %p74, %p75
      %p77 = scmp.ne.s32.totalorder %s69, %s72
      %p78 = scmp.eq.s32.totalorder %s19, 0
      %p79 = por %p77, %p78
      %p80 = scmp.ne.s32.totalorder %s69, %s72
      %p81 = scmp.eq.s32.totalorder %s24, 3
      %p82 = por %p80, %p81
      %p83 = scmp.ne.s32.totalorder %s72, %s73
      %p84 = scmp.eq.s32.totalorder %s24, 0
      %p85 = por %p83, %p84
      %p86 = scmp.ne.s32.totalorder %s72, %s73
      %p87 = scmp.eq.s32.totalorder %s25, 3
      %p88 = por %p86, %p87
      %p90 = scmp.ne.s32.totalorder %s73, %s89
      %p91 = scmp.eq.s32.totalorder %s25, 0
      %p92 = por %p90, %p91
      %p93 = scmp.le.s32.totalorder 1, %s19
      %p94 = scmp.lt.s32.totalorder %s19, 5
      %p95 = pnand %p93, %p94
      %p96 = pneg %p95
      // Predicated region
      $region9: #{tpu_custom_call.1} parent=5 // pred_check
        _
      $region10: #{tpu_custom_call.1} parent=5 // pred_check_branch
        %98 = sbr.rel (%p95) target = $region12
      $region11: #{tpu_custom_call.1} parent=5 // pred_region
        %s99 = ssub.s32 %s19, 1
      $region12: #{tpu_custom_call.1} parent=5 // pred_fallthru
        _
      %p100 = scmp.lt.s32.totalorder %s19, 4
      // Predicated region
      $region13: #{tpu_custom_call.1} parent=5 // pred_check
        %p101 = pneg %p100
      $region14: #{tpu_custom_call.1} parent=5 // pred_check_branch
        %103 = sbr.rel (%p101) target = $region16
      $region15: #{tpu_custom_call.1} parent=5 // pred_region
        // Predicated region
        $region17: #{tpu_custom_call.1} parent=15 // pred_check
          %p104 = pneg %p51
        $region18: #{tpu_custom_call.1} parent=15 // pred_check_branch
          %106 = sbr.rel (%p104) target = $region20
        $region19: #{tpu_custom_call.1} parent=15 // pred_region
          %s107 = sand.u32 %s41, 1
          %s108 = scalar_lea.sflag [#allocation7], %s107
          %s109 = sand.u32 %s41, 1
          %s110 = smul.addr %s109, 16
          %s111 = scalar_lea.vmem [#allocation6], %s110
          %s113 = ssub.s32 256, 256
          %114 = vsyncadd %s108, %s113
          %s115 = smul.addr %s26, 2
          %s116 = smul.addr %s115, 128
          %s117 = scalar_lea.hbm %s1, %s116
          %s119 = sshll.u32 %s111, 4
          %s120 = int_to_ptr.vmem [resolvable:$true] %s119
          %122 = dma.hbm_to_vmem [thread:$0]  %s117, 256, %s120, %s108
        $region20: #{tpu_custom_call.1} parent=15 // pred_fallthru
          _
      $region16: #{tpu_custom_call.1} parent=5 // pred_fallthru
        _
      %p123 = scmp.le.s32.totalorder 1, %s19
      %p124 = scmp.lt.s32.totalorder %s19, 5
      %p125 = pnand %p123, %p124
      %p126 = pneg %p125
      // Predicated region
      $region21: #{tpu_custom_call.1} parent=5 // pred_check
        _
      $region22: #{tpu_custom_call.1} parent=5 // pred_check_branch
        %128 = sbr.rel (%p125) target = $region24
      $region23: #{tpu_custom_call.1} parent=5 // pred_region
        %s129 = ssub.s32 %s19, 1
        %s130 = sand.u32 %s44, 1
        %s131 = scalar_lea.sflag [#allocation7], %s130
        %s132 = sand.u32 %s44, 1
        %s133 = smul.addr %s132, 16
        %s134 = scalar_lea.vmem [#allocation6], %s133
        // Predicated region
        $region25: #{tpu_custom_call.1} parent=23 // pred_check
          %p135 = pneg %p57
        $region26: #{tpu_custom_call.1} parent=23 // pred_check_branch
          %137 = sbr.rel (%p135) target = $region28
        $region27: #{tpu_custom_call.1} parent=23 // pred_region
          %138 = dma.done %s131, 256
        $region28: #{tpu_custom_call.1} parent=23 // pred_fallthru
          _
        %s139 = sand.u32 %s44, 1
        %s140 = scalar_lea.sflag [#allocation7], %s139
        %s141 = sand.u32 %s44, 1
        %s142 = smul.addr %s141, 16
        %s143 = scalar_lea.vmem [#allocation6], %s142
        %p144 = pneg %p57
        %p145 = pneg %p54
        %p146 = pneg %p85
        %p147 = pneg %p82
        %s148 = sand.u32 %s72, 1
        %s149 = scalar_lea.sflag [#allocation8], %s148
        %s150 = sand.u32 %s72, 1
        %s151 = smul.addr %s150, 16
        %s152 = scalar_lea.vmem [#allocation9], %s151
        %s153 = smul.u32 %s28, 8
        %p154 = scmp.lt.s32.totalorder %s29, 0
        %s155 = ssub.s32 0, %s29
        %s156 = scalar_select %p154, %s155, %s29
        %s157 = sand.u32 %s156, 1
        %s158 = ssub.s32 0, %s157
        %s159 = scalar_select %p154, %s158, %s157
        %p160 = scmp.ne.s32.totalorder %s159, 0
        %p161 = scmp.lt.s32.totalorder %s159, 0
        %p162 = pnand %p161, %p160
        %p163 = pneg %p162
        %s164 = sadd.s32 %s159, 2
        %s165 = scalar_select %p163, %s164, %s159
        %p166 = scmp.eq.s32.totalorder %s29, 0
        // Predicated region
        $region29: #{tpu_custom_call.1} parent=23 // pred_check
          %p167 = pneg %p166
        $region30: #{tpu_custom_call.1} parent=23 // pred_check_branch
          %169 = sbr.rel (%p167) target = $region32
        $region31: #{tpu_custom_call.1} parent=23 // pred_region
          %s170 = sadd.s32 %s153, 0
          %s171 = sshra.s32 %s170, 7
          %s172 = sand.u32 %s170, 127
          %s173 = sadd.s32 %s171, %s29
          %s174 = smul.u32 %s173, 128
          %s175 = sshra.s32 %s170, 7
          %s176 = sand.u32 %s170, 127
          %s177 = sadd.s32 %s174, %s176
          %s178 = sld [smem:[#allocation5 + %s177]]
          %s179 = sshrl.u32 %s178, 3
          %s180 = sand.u32 %s178, 7
          %s181 = smul.u32 %s179, 16
          %s182 = sadd.s32 %s180, %s181
          %s183 = smul.addr %s182, 16
          %s184 = scalar_lea.hbm %s2, %s183
          %s185 = smul.u32 0, 16
          %s186 = sadd.s32 0, %s185
          %s187 = scalar_lea.vmem [#allocation2], %s186
          %s189 = sshll.u32 %s187, 4
          %s190 = int_to_ptr.vmem [resolvable:$true] %s189
          %192 = dma.hbm_to_vmem [thread:$0]  %s184, 32, %s190, [#allocation3], 128, 128, 1
          %s193 = sadd.s32 0, 1
          %s194 = sadd.s32 %s153, %s193
          %s195 = sshra.s32 %s194, 7
          %s196 = sand.u32 %s194, 127
          %s197 = sadd.s32 %s195, %s29
          %s198 = smul.u32 %s197, 128
          %s199 = sshra.s32 %s194, 7
          %s200 = sand.u32 %s194, 127
          %s201 = sadd.s32 %s198, %s200
          %s202 = sld [smem:[#allocation5 + %s201]]
          %s203 = sshrl.u32 %s202, 3
          %s204 = sand.u32 %s202, 7
          %s205 = smul.u32 %s203, 16
          %s206 = sadd.s32 %s204, %s205
          %s207 = smul.addr %s206, 16
          %s208 = scalar_lea.hbm %s2, %s207
          %s209 = sshrl.u32 %s193, 3
          %s210 = sand.u32 %s193, 7
          %s211 = smul.u32 %s209, 16
          %s212 = sadd.s32 %s210, %s211
          %s213 = scalar_lea.vmem [#allocation2], %s212
          %s215 = sshll.u32 %s213, 4
          %s216 = int_to_ptr.vmem [resolvable:$true] %s215
          %218 = dma.hbm_to_vmem [thread:$0]  %s208, 32, %s216, [#allocation3], 128, 128, 1
          %s219 = sadd.s32 0, 2
          %s220 = sadd.s32 %s153, %s219
          %s221 = sshra.s32 %s220, 7
          %s222 = sand.u32 %s220, 127
          %s223 = sadd.s32 %s221, %s29
          %s224 = smul.u32 %s223, 128
          %s225 = sshra.s32 %s220, 7
          %s226 = sand.u32 %s220, 127
          %s227 = sadd.s32 %s224, %s226
          %s228 = sld [smem:[#allocation5 + %s227]]
          %s229 = sshrl.u32 %s228, 3
          %s230 = sand.u32 %s228, 7
          %s231 = smul.u32 %s229, 16
          %s232 = sadd.s32 %s230, %s231
          %s233 = smul.addr %s232, 16
          %s234 = scalar_lea.hbm %s2, %s233
          %s235 = sshrl.u32 %s219, 3
          %s236 = sand.u32 %s219, 7
          %s237 = smul.u32 %s235, 16
          %s238 = sadd.s32 %s236, %s237
          %s239 = scalar_lea.vmem [#allocation2], %s238
          %s241 = sshll.u32 %s239, 4
          %s242 = int_to_ptr.vmem [resolvable:$true] %s241
          %244 = dma.hbm_to_vmem [thread:$0]  %s234, 32, %s242, [#allocation3], 128, 128, 1
          %s245 = sadd.s32 0, 3
          %s246 = sadd.s32 %s153, %s245
          %s247 = sshra.s32 %s246, 7
          %s248 = sand.u32 %s246, 127
          %s249 = sadd.s32 %s247, %s29
          %s250 = smul.u32 %s249, 128
          %s251 = sshra.s32 %s246, 7
          %s252 = sand.u32 %s246, 127
          %s253 = sadd.s32 %s250, %s252
          %s254 = sld [smem:[#allocation5 + %s253]]
          %s255 = sshrl.u32 %s254, 3
          %s256 = sand.u32 %s254, 7
          %s257 = smul.u32 %s255, 16
          %s258 = sadd.s32 %s256, %s257
          %s259 = smul.addr %s258, 16
          %s260 = scalar_lea.hbm %s2, %s259
          %s261 = sshrl.u32 %s245, 3
          %s262 = sand.u32 %s245, 7
          %s263 = smul.u32 %s261, 16
          %s264 = sadd.s32 %s262, %s263
          %s265 = scalar_lea.vmem [#allocation2], %s264
          %s267 = sshll.u32 %s265, 4
          %s268 = int_to_ptr.vmem [resolvable:$true] %s267
          %270 = dma.hbm_to_vmem [thread:$0]  %s260, 32, %s268, [#allocation3], 128, 128, 1
          %s271 = sadd.s32 0, 4
          %s272 = sadd.s32 %s153, %s271
          %s273 = sshra.s32 %s272, 7
          %s274 = sand.u32 %s272, 127
          %s275 = sadd.s32 %s273, %s29
          %s276 = smul.u32 %s275, 128
          %s277 = sshra.s32 %s272, 7
          %s278 = sand.u32 %s272, 127
          %s279 = sadd.s32 %s276, %s278
          %s280 = sld [smem:[#allocation5 + %s279]]
          %s281 = sshrl.u32 %s280, 3
          %s282 = sand.u32 %s280, 7
          %s283 = smul.u32 %s281, 16
          %s284 = sadd.s32 %s282, %s283
          %s285 = smul.addr %s284, 16
          %s286 = scalar_lea.hbm %s2, %s285
          %s287 = sshrl.u32 %s271, 3
          %s288 = sand.u32 %s271, 7
          %s289 = smul.u32 %s287, 16
          %s290 = sadd.s32 %s288, %s289
          %s291 = scalar_lea.vmem [#allocation2], %s290
          %s293 = sshll.u32 %s291, 4
          %s294 = int_to_ptr.vmem [resolvable:$true] %s293
          %296 = dma.hbm_to_vmem [thread:$0]  %s286, 32, %s294, [#allocation3], 128, 128, 1
          %s297 = sadd.s32 0, 5
          %s298 = sadd.s32 %s153, %s297
          %s299 = sshra.s32 %s298, 7
          %s300 = sand.u32 %s298, 127
          %s301 = sadd.s32 %s299, %s29
          %s302 = smul.u32 %s301, 128
          %s303 = sshra.s32 %s298, 7
          %s304 = sand.u32 %s298, 127
          %s305 = sadd.s32 %s302, %s304
          %s306 = sld [smem:[#allocation5 + %s305]]
          %s307 = sshrl.u32 %s306, 3
          %s308 = sand.u32 %s306, 7
          %s309 = smul.u32 %s307, 16
          %s310 = sadd.s32 %s308, %s309
          %s311 = smul.addr %s310, 16
          %s312 = scalar_lea.hbm %s2, %s311
          %s313 = sshrl.u32 %s297, 3
          %s314 = sand.u32 %s297, 7
          %s315 = smul.u32 %s313, 16
          %s316 = sadd.s32 %s314, %s315
          %s317 = scalar_lea.vmem [#allocation2], %s316
          %s319 = sshll.u32 %s317, 4
          %s320 = int_to_ptr.vmem [resolvable:$true] %s319
          %322 = dma.hbm_to_vmem [thread:$0]  %s312, 32, %s320, [#allocation3], 128, 128, 1
          %s323 = sadd.s32 0, 6
          %s324 = sadd.s32 %s153, %s323
          %s325 = sshra.s32 %s324, 7
          %s326 = sand.u32 %s324, 127
          %s327 = sadd.s32 %s325, %s29
          %s328 = smul.u32 %s327, 128
          %s329 = sshra.s32 %s324, 7
          %s330 = sand.u32 %s324, 127
          %s331 = sadd.s32 %s328, %s330
          %s332 = sld [smem:[#allocation5 + %s331]]
          %s333 = sshrl.u32 %s332, 3
          %s334 = sand.u32 %s332, 7
          %s335 = smul.u32 %s333, 16
          %s336 = sadd.s32 %s334, %s335
          %s337 = smul.addr %s336, 16
          %s338 = scalar_lea.hbm %s2, %s337
          %s339 = sshrl.u32 %s323, 3
          %s340 = sand.u32 %s323, 7
          %s341 = smul.u32 %s339, 16
          %s342 = sadd.s32 %s340, %s341
          %s343 = scalar_lea.vmem [#allocation2], %s342
          %s345 = sshll.u32 %s343, 4
          %s346 = int_to_ptr.vmem [resolvable:$true] %s345
          %348 = dma.hbm_to_vmem [thread:$0]  %s338, 32, %s346, [#allocation3], 128, 128, 1
          %s349 = sadd.s32 0, 7
          %s350 = sadd.s32 %s153, %s349
          %s351 = sshra.s32 %s350, 7
          %s352 = sand.u32 %s350, 127
          %s353 = sadd.s32 %s351, %s29
          %s354 = smul.u32 %s353, 128
          %s355 = sshra.s32 %s350, 7
          %s356 = sand.u32 %s350, 127
          %s357 = sadd.s32 %s354, %s356
          %s358 = sld [smem:[#allocation5 + %s357]]
          %s359 = sshrl.u32 %s358, 3
          %s360 = sand.u32 %s358, 7
          %s361 = smul.u32 %s359, 16
          %s362 = sadd.s32 %s360, %s361
          %s363 = smul.addr %s362, 16
          %s364 = scalar_lea.hbm %s2, %s363
          %s365 = sshrl.u32 %s349, 3
          %s366 = sand.u32 %s349, 7
          %s367 = smul.u32 %s365, 16
          %s368 = sadd.s32 %s366, %s367
          %s369 = scalar_lea.vmem [#allocation2], %s368
          %s371 = sshll.u32 %s369, 4
          %s372 = int_to_ptr.vmem [resolvable:$true] %s371
          %374 = dma.hbm_to_vmem [thread:$0]  %s364, 32, %s372, [#allocation3], 128, 128, 1
        $region32: #{tpu_custom_call.1} parent=23 // pred_fallthru
          _
        %s375 = sadd.s32 %s29, 1
        %p376 = scmp.lt.s32.totalorder %s375, 2
        // Predicated region
        $region33: #{tpu_custom_call.1} parent=23 // pred_check
          %p377 = pneg %p376
        $region34: #{tpu_custom_call.1} parent=23 // pred_check_branch
          %379 = sbr.rel (%p377) target = $region36
        $region35: #{tpu_custom_call.1} parent=23 // pred_region
          %s380 = ssub.s32 1, %s165
          %s381 = sadd.s32 %s153, 0
          %s382 = sshra.s32 %s381, 7
          %s383 = sand.u32 %s381, 127
          %s384 = sadd.s32 %s382, %s375
          %s385 = smul.u32 %s384, 128
          %s386 = sshra.s32 %s381, 7
          %s387 = sand.u32 %s381, 127
          %s388 = sadd.s32 %s385, %s387
          %s389 = sld [smem:[#allocation5 + %s388]]
          %s390 = sshrl.u32 %s389, 3
          %s391 = sand.u32 %s389, 7
          %s392 = smul.u32 %s390, 16
          %s393 = sadd.s32 %s391, %s392
          %s394 = smul.addr %s393, 16
          %s395 = scalar_lea.hbm %s2, %s394
          %s396 = smul.u32 0, 16
          %s397 = sadd.s32 0, %s396
          %s398 = smul.u32 %s380, 16
          %s399 = sadd.s32 %s397, %s398
          %s400 = scalar_lea.vmem [#allocation2], %s399
          %s401 = scalar_lea.sflag [#allocation3], %s380
          %s403 = sshll.u32 %s400, 4
          %s404 = int_to_ptr.vmem [resolvable:$true] %s403
          %406 = dma.hbm_to_vmem [thread:$0]  %s395, 32, %s404, %s401, 128, 128, 1
          %s407 = sadd.s32 0, 1
          %s408 = sadd.s32 %s153, %s407
          %s409 = sshra.s32 %s408, 7
          %s410 = sand.u32 %s408, 127
          %s411 = sadd.s32 %s409, %s375
          %s412 = smul.u32 %s411, 128
          %s413 = sshra.s32 %s408, 7
          %s414 = sand.u32 %s408, 127
          %s415 = sadd.s32 %s412, %s414
          %s416 = sld [smem:[#allocation5 + %s415]]
          %s417 = sshrl.u32 %s416, 3
          %s418 = sand.u32 %s416, 7
          %s419 = smul.u32 %s417, 16
          %s420 = sadd.s32 %s418, %s419
          %s421 = smul.addr %s420, 16
          %s422 = scalar_lea.hbm %s2, %s421
          %s423 = sshrl.u32 %s407, 3
          %s424 = sand.u32 %s407, 7
          %s425 = smul.u32 %s423, 16
          %s426 = sadd.s32 %s424, %s425
          %s427 = sadd.s32 %s426, %s398
          %s428 = scalar_lea.vmem [#allocation2], %s427
          %s430 = sshll.u32 %s428, 4
          %s431 = int_to_ptr.vmem [resolvable:$true] %s430
          %433 = dma.hbm_to_vmem [thread:$0]  %s422, 32, %s431, %s401, 128, 128, 1
          %s434 = sadd.s32 0, 2
          %s435 = sadd.s32 %s153, %s434
          %s436 = sshra.s32 %s435, 7
          %s437 = sand.u32 %s435, 127
          %s438 = sadd.s32 %s436, %s375
          %s439 = smul.u32 %s438, 128
          %s440 = sshra.s32 %s435, 7
          %s441 = sand.u32 %s435, 127
          %s442 = sadd.s32 %s439, %s441
          %s443 = sld [smem:[#allocation5 + %s442]]
          %s444 = sshrl.u32 %s443, 3
          %s445 = sand.u32 %s443, 7
          %s446 = smul.u32 %s444, 16
          %s447 = sadd.s32 %s445, %s446
          %s448 = smul.addr %s447, 16
          %s449 = scalar_lea.hbm %s2, %s448
          %s450 = sshrl.u32 %s434, 3
          %s451 = sand.u32 %s434, 7
          %s452 = smul.u32 %s450, 16
          %s453 = sadd.s32 %s451, %s452
          %s454 = sadd.s32 %s453, %s398
          %s455 = scalar_lea.vmem [#allocation2], %s454
          %s457 = sshll.u32 %s455, 4
          %s458 = int_to_ptr.vmem [resolvable:$true] %s457
          %460 = dma.hbm_to_vmem [thread:$0]  %s449, 32, %s458, %s401, 128, 128, 1
          %s461 = sadd.s32 0, 3
          %s462 = sadd.s32 %s153, %s461
          %s463 = sshra.s32 %s462, 7
          %s464 = sand.u32 %s462, 127
          %s465 = sadd.s32 %s463, %s375
          %s466 = smul.u32 %s465, 128
          %s467 = sshra.s32 %s462, 7
          %s468 = sand.u32 %s462, 127
          %s469 = sadd.s32 %s466, %s468
          %s470 = sld [smem:[#allocation5 + %s469]]
          %s471 = sshrl.u32 %s470, 3
          %s472 = sand.u32 %s470, 7
          %s473 = smul.u32 %s471, 16
          %s474 = sadd.s32 %s472, %s473
          %s475 = smul.addr %s474, 16
          %s476 = scalar_lea.hbm %s2, %s475
          %s477 = sshrl.u32 %s461, 3
          %s478 = sand.u32 %s461, 7
          %s479 = smul.u32 %s477, 16
          %s480 = sadd.s32 %s478, %s479
          %s481 = sadd.s32 %s480, %s398
          %s482 = scalar_lea.vmem [#allocation2], %s481
          %s484 = sshll.u32 %s482, 4
          %s485 = int_to_ptr.vmem [resolvable:$true] %s484
          %487 = dma.hbm_to_vmem [thread:$0]  %s476, 32, %s485, %s401, 128, 128, 1
          %s488 = sadd.s32 0, 4
          %s489 = sadd.s32 %s153, %s488
          %s490 = sshra.s32 %s489, 7
          %s491 = sand.u32 %s489, 127
          %s492 = sadd.s32 %s490, %s375
          %s493 = smul.u32 %s492, 128
          %s494 = sshra.s32 %s489, 7
          %s495 = sand.u32 %s489, 127
          %s496 = sadd.s32 %s493, %s495
          %s497 = sld [smem:[#allocation5 + %s496]]
          %s498 = sshrl.u32 %s497, 3
          %s499 = sand.u32 %s497, 7
          %s500 = smul.u32 %s498, 16
          %s501 = sadd.s32 %s499, %s500
          %s502 = smul.addr %s501, 16
          %s503 = scalar_lea.hbm %s2, %s502
          %s504 = sshrl.u32 %s488, 3
          %s505 = sand.u32 %s488, 7
          %s506 = smul.u32 %s504, 16
          %s507 = sadd.s32 %s505, %s506
          %s508 = sadd.s32 %s507, %s398
          %s509 = scalar_lea.vmem [#allocation2], %s508
          %s511 = sshll.u32 %s509, 4
          %s512 = int_to_ptr.vmem [resolvable:$true] %s511
          %514 = dma.hbm_to_vmem [thread:$0]  %s503, 32, %s512, %s401, 128, 128, 1
          %s515 = sadd.s32 0, 5
          %s516 = sadd.s32 %s153, %s515
          %s517 = sshra.s32 %s516, 7
          %s518 = sand.u32 %s516, 127
          %s519 = sadd.s32 %s517, %s375
          %s520 = smul.u32 %s519, 128
          %s521 = sshra.s32 %s516, 7
          %s522 = sand.u32 %s516, 127
          %s523 = sadd.s32 %s520, %s522
          %s524 = sld [smem:[#allocation5 + %s523]]
          %s525 = sshrl.u32 %s524, 3
          %s526 = sand.u32 %s524, 7
          %s527 = smul.u32 %s525, 16
          %s528 = sadd.s32 %s526, %s527
          %s529 = smul.addr %s528, 16
          %s530 = scalar_lea.hbm %s2, %s529
          %s531 = sshrl.u32 %s515, 3
          %s532 = sand.u32 %s515, 7
          %s533 = smul.u32 %s531, 16
          %s534 = sadd.s32 %s532, %s533
          %s535 = sadd.s32 %s534, %s398
          %s536 = scalar_lea.vmem [#allocation2], %s535
          %s538 = sshll.u32 %s536, 4
          %s539 = int_to_ptr.vmem [resolvable:$true] %s538
          %541 = dma.hbm_to_vmem [thread:$0]  %s530, 32, %s539, %s401, 128, 128, 1
          %s542 = sadd.s32 0, 6
          %s543 = sadd.s32 %s153, %s542
          %s544 = sshra.s32 %s543, 7
          %s545 = sand.u32 %s543, 127
          %s546 = sadd.s32 %s544, %s375
          %s547 = smul.u32 %s546, 128
          %s548 = sshra.s32 %s543, 7
          %s549 = sand.u32 %s543, 127
          %s550 = sadd.s32 %s547, %s549
          %s551 = sld [smem:[#allocation5 + %s550]]
          %s552 = sshrl.u32 %s551, 3
          %s553 = sand.u32 %s551, 7
          %s554 = smul.u32 %s552, 16
          %s555 = sadd.s32 %s553, %s554
          %s556 = smul.addr %s555, 16
          %s557 = scalar_lea.hbm %s2, %s556
          %s558 = sshrl.u32 %s542, 3
          %s559 = sand.u32 %s542, 7
          %s560 = smul.u32 %s558, 16
          %s561 = sadd.s32 %s559, %s560
          %s562 = sadd.s32 %s561, %s398
          %s563 = scalar_lea.vmem [#allocation2], %s562
          %s565 = sshll.u32 %s563, 4
          %s566 = int_to_ptr.vmem [resolvable:$true] %s565
          %568 = dma.hbm_to_vmem [thread:$0]  %s557, 32, %s566, %s401, 128, 128, 1
          %s569 = sadd.s32 0, 7
          %s570 = sadd.s32 %s153, %s569
          %s571 = sshra.s32 %s570, 7
          %s572 = sand.u32 %s570, 127
          %s573 = sadd.s32 %s571, %s375
          %s574 = smul.u32 %s573, 128
          %s575 = sshra.s32 %s570, 7
          %s576 = sand.u32 %s570, 127
          %s577 = sadd.s32 %s574, %s576
          %s578 = sld [smem:[#allocation5 + %s577]]
          %s579 = sshrl.u32 %s578, 3
          %s580 = sand.u32 %s578, 7
          %s581 = smul.u32 %s579, 16
          %s582 = sadd.s32 %s580, %s581
          %s583 = smul.addr %s582, 16
          %s584 = scalar_lea.hbm %s2, %s583
          %s585 = sshrl.u32 %s569, 3
          %s586 = sand.u32 %s569, 7
          %s587 = smul.u32 %s585, 16
          %s588 = sadd.s32 %s586, %s587
          %s589 = sadd.s32 %s588, %s398
          %s590 = scalar_lea.vmem [#allocation2], %s589
          %s592 = sshll.u32 %s590, 4
          %s593 = int_to_ptr.vmem [resolvable:$true] %s592
          %595 = dma.hbm_to_vmem [thread:$0]  %s584, 32, %s593, %s401, 128, 128, 1
        $region36: #{tpu_custom_call.1} parent=23 // pred_fallthru
          _
        %s596 = smul.u32 %s165, 2
        %s597 = smul.addr %s596, 8
        %s598 = scalar_lea.vmem [#allocation2], %s597
        %s599 = scalar_lea.sflag [#allocation3], %s165
        %s600 = smul.u32 8, 1
        %s601 = smul.u32 %s600, 2
        %s602 = sshll.u32 %s601, 4
        %603 = dma.done %s599, %s602
        %v604 = vld [vmem:[%s598] sm:$0xff]
        %v605 = vld [vmem:[%s598 + $0x8] sm:$0xff]
        %v606 = vld [vmem:[%s134] sm:$0xff]
        %v607 = vld [vmem:[%s134 + $0x8] sm:$0xff]
        %v608 = vadd.f32 %v604, %v606
        %v609 = vadd.f32 %v605, %v607
        %610 = vst [vmem:[%s152] sm:$0xff] %v608
        %611 = vst [vmem:[%s152 + $0x8] sm:$0xff] %v609
        %s612 = sand.u32 %s72, 1
        %s613 = scalar_lea.sflag [#allocation8], %s612
        %s614 = sand.u32 %s72, 1
        %s615 = smul.addr %s614, 16
        %s616 = scalar_lea.vmem [#allocation9], %s615
        // Predicated region
        $region37: #{tpu_custom_call.1} parent=23 // pred_check
          %p617 = pneg %p82
        $region38: #{tpu_custom_call.1} parent=23 // pred_check_branch
          %619 = sbr.rel (%p617) target = $region40
        $region39: #{tpu_custom_call.1} parent=23 // pred_region
          %s621 = ssub.s32 256, 256
          %622 = vsyncadd %s613, %s621
          %s623 = smul.addr %s28, 2
          %s624 = smul.addr %s29, 4
          %s625 = sadd.s32 %s623, %s624
          %s626 = smul.addr %s625, 128
          %s627 = scalar_lea.hbm %s3, %s626
          %s629 = sshll.u32 %s616, 4
          %s630 = int_to_ptr.vmem [resolvable:$true] %s629
          %632 = dma.vmem_to_hbm [thread:$0]  %s630, 256, %s627, %s613
        $region40: #{tpu_custom_call.1} parent=23 // pred_fallthru
          _
      $region24: #{tpu_custom_call.1} parent=5 // pred_fallthru
        _
      %p633 = scmp.le.s32.totalorder 2, %s19
      // Predicated region
      $region41: #{tpu_custom_call.1} parent=5 // pred_check
        %p634 = pneg %p633
      $region42: #{tpu_custom_call.1} parent=5 // pred_check_branch
        %636 = sbr.rel (%p634) target = $region44
      $region43: #{tpu_custom_call.1} parent=5 // pred_region
        %s637 = ssub.s32 %s19, 2
        // Predicated region
        $region45: #{tpu_custom_call.1} parent=43 // pred_check
          %p638 = pneg %p88
        $region46: #{tpu_custom_call.1} parent=43 // pred_check_branch
          %640 = sbr.rel (%p638) target = $region48
        $region47: #{tpu_custom_call.1} parent=43 // pred_region
          %s641 = sand.u32 %s73, 1
          %s642 = scalar_lea.sflag [#allocation8], %s641
          %s643 = sand.u32 %s73, 1
          %s644 = smul.addr %s643, 16
          %s645 = scalar_lea.vmem [#allocation9], %s644
          %646 = dma.done %s642, 256
        $region48: #{tpu_custom_call.1} parent=43 // pred_fallthru
          _
      $region44: #{tpu_custom_call.1} parent=5 // pred_fallthru
        _
    $region6: #{tpu_custom_call.1} parent=1 // loop_footer
      %s23 = sadd.s32 1, %s19
    $region7: #{tpu_custom_call.1} parent=1 // loop_footer_branch
      %18 = sbr.rel target = $region3
    $region8: #{tpu_custom_call.1} parent=1 // loop_exit
      _
    %647 = vsyncpa [#allocation7], 1
    %s648 = scalar_lea.sflag [#allocation7], 1
    %649 = vsyncpa %s648, 1
    %650 = vsyncpa [#allocation8], 1
    %s651 = scalar_lea.sflag [#allocation8], 1
    %652 = vsyncpa %s651, 1
  %653 = vsyncmov [#allocation3]
  %s654 = vpop.sfrf %653
  %p655 = scmp.eq.s32.totalorder %s654, 0
  %p656 = pneg %p655
  %658 = shalt.err (%p656)
  %s659 = scalar_lea.sflag [#allocation3], 1
  %660 = vsyncmov %s659
  %s661 = vpop.sfrf %660
  %p662 = scmp.eq.s32.totalorder %s661, 0
  %p663 = pneg %p662
  %665 = shalt.err (%p663)

</llo_original>
